<compile_context>
chip_gen: v7x
topology: tpu7x:2x2x1
jax: 0.10.0
libtpu: 0.0.40
codegen_flags: <defaults>
</compile_context>

<pallas_src>
import numpy as np
import jax
import jax.numpy as jnp
from jax.experimental import pallas as pl
from jax.experimental.pallas import tpu as pltpu
from typing import Optional


class NestedTensor:
    def __init__(self, tensors, mask: Optional[jnp.ndarray]):
        self.tensors = tensors
        self.mask = mask

    def decompose(self):
        return (self.tensors, self.mask)

    def __repr__(self):
        return str(self.tensors)


# ----------------------------------------------------------------------------
# Pallas kernel: one channel-half per grid step.
#   a_ref:   (rows, W+H)  rows of the block-diagonal [[col_t, 0], [0, row_t]]
#   p_ref:   (W+H, H*W)   stacked one-hot flatten selector [[T], [S]]
#   out_ref: (rows, H*W)  lane-dense slab half; single unmasked full-block store
# ----------------------------------------------------------------------------
def _pos_embed_kernel(a_ref, p_ref, out_ref):
    out_ref[...] = jnp.dot(
        a_ref[...], p_ref[...], preferred_element_type=jnp.float32
    ).astype(out_ref.dtype)


# ----------------------------------------------------------------------------
# Wrapper
# ----------------------------------------------------------------------------
def position_embedding_learned_forward(A, P, batch, H, W, dtype=jnp.float32):
    """A: (2F, W+H) block-diagonal embedding matrix; P: (W+H, H*W) selector."""
    two_f = A.shape[0]
    HW = H * W
    F_ = two_f // 2

    # Split the channel dim into two F-sized tiles so the two grid steps can be
    # sharded across v7x's two TensorCores; fall back to one block if F is not
    # sublane-aligned (the (8,128) block rule).
    if F_ % 8 == 0 and two_f == 2 * F_:
        n_steps, rows = 2, F_
    else:
        n_steps, rows = 1, two_f

    out_flat = pl.pallas_call(
        _pos_embed_kernel,
        out_shape=jax.ShapeDtypeStruct((two_f, HW), dtype),
        grid=(n_steps,),
        in_specs=[
            pl.BlockSpec((rows, A.shape[1]), lambda c: (c, 0)),
            pl.BlockSpec(P.shape, lambda c: (0, 0)),
        ],
        out_specs=pl.BlockSpec((rows, HW), lambda c: (c, 0)),
        compiler_params=pltpu.CompilerParams(
            dimension_semantics=("parallel",)),
    )(A, P)

    # Contiguous reshape (free) + batch broadcast in the wrapper: the slab is
    # batch-invariant, so we never rewrite it B times from the kernel.
    pos = out_flat.reshape(1, two_f, H, W)
    return jnp.broadcast_to(pos, (batch, two_f, H, W))


class PositionEmbeddingLearned:
    """Learnable position embedding (JAX/Pallas version of the PyTorch module)."""

    def __init__(self, num_pos_feats=256, key=None, dtype=jnp.float32):
        if key is None:
            key = jax.random.PRNGKey(0)
        k_row, k_col = jax.random.split(key)
        # nn.init.uniform_ -> U[0, 1)
        self.row_embed = jax.random.uniform(k_row, (50, num_pos_feats), jnp.float32)
        self.col_embed = jax.random.uniform(k_col, (50, num_pos_feats), jnp.float32)
        self.num_pos_feats = num_pos_feats
        self.dtype = dtype
        # Per-(H, W) cache of the packed weight matrix + flatten selector so the
        # forward path dispatches only the pallas_call.  Clear if weights change.
        self._cache = {}

    def _packed(self, H, W):
        key = (H, W)
        if key not in self._cache:
            assert H <= self.row_embed.shape[0] and W <= self.col_embed.shape[0], \
                "H/W exceed the 50-row embedding tables (same limit as PyTorch)."
            F_ = self.num_pos_feats
            col_t = jnp.transpose(self.col_embed[:W, :]).astype(self.dtype)  # (F, W)
            row_t = jnp.transpose(self.row_embed[:H, :]).astype(self.dtype)  # (F, H)
            # Block-diagonal embedding matrix A = [[col_t, 0], [0, row_t]] : (2F, W+H)
            A = jnp.zeros((2 * F_, W + H), self.dtype)
            A = A.at[:F_, :W].set(col_t)
            A = A.at[F_:, W:].set(row_t)
            # Constant one-hot flatten selector P = [[T], [S]] : (W+H, H*W)
            k = np.arange(H * W)
            T = (k[None, :] % W) == np.arange(W)[:, None]    # tile col_t along lanes
            S = (k[None, :] // W) == np.arange(H)[:, None]   # repeat row_t W-wise
            P = jnp.asarray(np.concatenate([T, S], axis=0).astype(np.float32)).astype(self.dtype)
            self._cache[key] = (A, P)
        return self._cache[key]

    def __call__(self, tensor_list: NestedTensor):
        x = tensor_list.tensors
        B = x.shape[0]
        H, W = x.shape[-2], x.shape[-1]
        A, P = self._packed(H, W)
        return position_embedding_learned_forward(A, P, B, H, W, dtype=self.dtype)


# ----------------------------------------------------------------------------
# Plain-JAX reference (mirrors the PyTorch forward) for verification
# ----------------------------------------------------------------------------
def _reference_forward(col_w, row_w, x):
    B = x.shape[0]
    H, W = x.shape[-2], x.shape[-1]
    x_emb = col_w[:W]                                            # [W, F]
    y_emb = row_w[:H]                                            # [H, F]
    pos = jnp.concatenate(
        [jnp.broadcast_to(x_emb[None, :, :], (H, W, x_emb.shape[1])),
         jnp.broadcast_to(y_emb[:, None, :], (H, W, y_emb.shape[1]))],
        axis=-1)                                                 # [H, W, 2F]
    pos = jnp.transpose(pos, (2, 0, 1))[None]                    # [1, 2F, H, W]
    return jnp.broadcast_to(pos, (B,) + pos.shape[1:])


# ----------------------------------------------------------------------------
# Main
# ----------------------------------------------------------------------------
if __name__ == "__main__":
    key = jax.random.PRNGKey(0)
    B, C, H, W, num_pos_feats = 2, 4, 16, 12, 32   # small shapes; H != W on purpose

    k_x, k_mod = jax.random.split(key)
    x = jax.random.normal(k_x, (B, C, H, W), jnp.float32)
    mask = jnp.zeros((B, H, W), dtype=bool)

    module = PositionEmbeddingLearned(num_pos_feats=num_pos_feats, key=k_mod)
    pos = module(NestedTensor(x, mask))
    pos = jax.block_until_ready(pos)

    assert pos.shape == (B, 2 * num_pos_feats, H, W), pos.shape
    ref = _reference_forward(module.col_embed, module.row_embed, x)
    assert jnp.allclose(pos, ref, rtol=1e-6, atol=1e-6), \
        float(jnp.max(jnp.abs(pos - ref)))

    print("KERNEL_OK")
</pallas_src>

<mosaic_0001>
module attributes {stable_mosaic.version = 11 : i64} {
  func.func @_pos_embed_kernel(%arg0: i32, %arg1: memref<32x28xf32, #tpu.memory_space<vmem>>, %arg2: memref<28x192xf32, #tpu.memory_space<vmem>>, %arg3: memref<32x192xf32, #tpu.memory_space<vmem>>) attributes {dimension_semantics = [#tpu.dimension_semantics<parallel>], iteration_bounds = array<i64: 2>, scalar_prefetch = 0 : i64, scratch_operands = 0 : i64, tpu.core_type = #tpu.core_type<tc>, window_params = [{transform_indices = @transform_0, window_bounds = array<i64: 32, 28>}, {pipeline_mode = #tpu.pipeline_mode<synchronous>, transform_indices = @transform_1, window_bounds = array<i64: 28, 192>}, {transform_indices = @transform_2, window_bounds = array<i64: 32, 192>}]} {
    %c0 = arith.constant 0 : index
    %c0_0 = arith.constant 0 : index
    %0 = vector.load %arg1[%c0, %c0_0] : memref<32x28xf32, #tpu.memory_space<vmem>>, vector<32x28xf32>
    %c0_1 = arith.constant 0 : index
    %c0_2 = arith.constant 0 : index
    %1 = vector.load %arg2[%c0_1, %c0_2] : memref<28x192xf32, #tpu.memory_space<vmem>>, vector<28x192xf32>
    %cst = arith.constant dense<0.000000e+00> : vector<32x192xf32>
    %2 = tpu.matmul %0, %1, %cst {dimension_numbers = #tpu.dot_dimension_numbers<[1], [0], [0], [1], [0, 0, 1, 1], [], []>} : vector<32x28xf32>, vector<28x192xf32>, vector<32x192xf32> -> vector<32x192xf32>
    %c0_3 = arith.constant 0 : index
    %c0_4 = arith.constant 0 : index
    %3 = vector.load %arg3[%c0_3, %c0_4] : memref<32x192xf32, #tpu.memory_space<vmem>>, vector<32x192xf32>
    tpu.vector_store %arg3[%c0_3, %c0_4], %2 {strides = array<i32>} : memref<32x192xf32, #tpu.memory_space<vmem>>, vector<32x192xf32>,
    return
  }
  func.func @transform_0(%arg0: i32) -> (i32, i32) {
    %c0_i32 = arith.constant 0 : i32
    %c0_i32_0 = arith.constant 0 : i32
    return %arg0, %c0_i32 : i32, i32
  }
  func.func @transform_1(%arg0: i32) -> (i32, i32) {
    %c0_i32 = arith.constant 0 : i32
    %c0_i32_0 = arith.constant 0 : i32
    %c0_i32_1 = arith.constant 0 : i32
    return %c0_i32, %c0_i32_0 : i32, i32
  }
  func.func @transform_2(%arg0: i32) -> (i32, i32) {
    %c0_i32 = arith.constant 0 : i32
    %c0_i32_0 = arith.constant 0 : i32
    return %arg0, %c0_i32 : i32, i32
  }
}

</mosaic_0001>

<llo_original>
// kernel: tpu_custom_call.1
$region0: #{tpu_custom_call.1}
  #allocation0 [shape = 'u32[]', space=smem, size = 0x4, offset = 0x4, fixed_abs, tag = 'smem constant byte address 0x4 - core index']
  #allocation1 [shape = 'u32[144,128]{1,0:T(1,128)}', space=vmem, size = 0x12000, scoped, tag = 'internal scratch']
  %s0 = inlined_call_operand.vmem [shape: f32[64,28], index: 0, kind: input, shape index: {}]
  %s1 = inlined_call_operand.vmem [shape: f32[28,192], index: 1, kind: input, shape index: {}]
  %s2 = inlined_call_operand.hbm [shape: f32[64,192], index: 2, kind: output, shape index: {}]
  %s3 = sld [smem:[#allocation0]]
  $region41: #{tpu_custom_call.1} parent=0
    _
  %s5 = ssub.s32 1, %s3
  %s6 = scalar_select 0, %s5, %s3
  $region1: #{tpu_custom_call.1} parent=0
    #allocation2 [shape = 'u8[65536]{0}', space=vmem, size = 0x10000, scoped, tag = 'output window, operand 0']
    #allocation3 [shape = 's32[2]{0}', space=sflag, size = 0x8, scoped, tag = 'scoped memory for tpu_custom_call.1']
    %7 = vsyncpa [#allocation3], 0
    %s8 = scalar_lea.sflag [#allocation3], 1
    %9 = vsyncpa %s8, 0
    loop: start=0, step=1, limit=4
    $region2: #{tpu_custom_call.1} parent=1 // loop_pre_header
      _
    $region3: #{tpu_custom_call.1} parent=1 // loop_header
      %s11 = sphi 0, %s15
      %p12 = scmp.ge.s32.totalorder %s11, 4
      %s21 = sphi 0, %s23
      %s24 = sphi 0, %s21
      %s25 = sphi 0, %s24
      %s41 = sphi 0, %s25
      %s45 = sphi 0, %s45
      %s47 = sphi 0, %s45
      %s48 = sphi 0, %s47
      %s62 = sphi 0, %s48
      %s68 = sphi 0, %s70
      %s71 = sphi 0, %s68
      %s72 = sphi 0, %s71
      %s88 = sphi 0, %s72
    $region4: #{tpu_custom_call.1} parent=1 // loop_header_branch
      %14 = sbr.rel (%p12) target = $region8
    $region5: #{tpu_custom_call.1} parent=1 // loop_body
      %s16 = ssub.s32 %s11, 1
      %s17 = ssub.s32 %s11, 2
      %s18 = sadd.s32 %s11, 1
      %s19 = ssub.s32 %s11, %s18
      %p20 = scmp.eq.s32.totalorder %s19, 0
      %s22 = sadd.s32 %s21, 1
      %s23 = scalar_select %p20, %s21, %s22
      %p26 = pneg %p20
      %p27 = scmp.eq.s32.totalorder %s11, 1
      %p28 = por %p26, %p27
      %p29 = scmp.ne.s32.totalorder %s21, %s24
      %p30 = scmp.eq.s32.totalorder %s11, 0
      %p31 = por %p29, %p30
      %p32 = scmp.ne.s32.totalorder %s21, %s24
      %p33 = scmp.eq.s32.totalorder %s16, 1
      %p34 = por %p32, %p33
      %p35 = scmp.ne.s32.totalorder %s24, %s25
      %p36 = scmp.eq.s32.totalorder %s16, 0
      %p37 = por %p35, %p36
      %p38 = scmp.ne.s32.totalorder %s24, %s25
      %p39 = scmp.eq.s32.totalorder %s17, 1
      %p40 = por %p38, %p39
      %p42 = scmp.ne.s32.totalorder %s25, %s41
      %p43 = scmp.eq.s32.totalorder %s17, 0
      %p44 = por %p42, %p43
      %s46 = sadd.s32 %s45, 1
      %p49 = scmp.eq.s32.totalorder %s11, 1
      %p50 = scmp.ne.s32.totalorder %s45, %s47
      %p51 = scmp.eq.s32.totalorder %s11, 0
      %p52 = por %p50, %p51
      %p53 = scmp.ne.s32.totalorder %s45, %s47
      %p54 = scmp.eq.s32.totalorder %s16, 1
      %p55 = por %p53, %p54
      %p56 = scmp.ne.s32.totalorder %s47, %s48
      %p57 = scmp.eq.s32.totalorder %s16, 0
      %p58 = por %p56, %p57
      %p59 = scmp.ne.s32.totalorder %s47, %s48
      %p60 = scmp.eq.s32.totalorder %s17, 1
      %p61 = por %p59, %p60
      %p63 = scmp.ne.s32.totalorder %s48, %s62
      %p64 = scmp.eq.s32.totalorder %s17, 0
      %p65 = por %p63, %p64
      %s66 = ssub.s32 %s11, %s18
      %p67 = scmp.eq.s32.totalorder %s66, 0
      %s69 = sadd.s32 %s68, 1
      %s70 = scalar_select %p67, %s68, %s69
      %p73 = pneg %p67
      %p74 = scmp.eq.s32.totalorder %s11, 1
      %p75 = por %p73, %p74
      %p76 = scmp.ne.s32.totalorder %s68, %s71
      %p77 = scmp.eq.s32.totalorder %s11, 0
      %p78 = por %p76, %p77
      %p79 = scmp.ne.s32.totalorder %s68, %s71
      %p80 = scmp.eq.s32.totalorder %s16, 1
      %p81 = por %p79, %p80
      %p82 = scmp.ne.s32.totalorder %s71, %s72
      %p83 = scmp.eq.s32.totalorder %s16, 0
      %p84 = por %p82, %p83
      %p85 = scmp.ne.s32.totalorder %s71, %s72
      %p86 = scmp.eq.s32.totalorder %s17, 1
      %p87 = por %p85, %p86
      %p89 = scmp.ne.s32.totalorder %s72, %s88
      %p90 = scmp.eq.s32.totalorder %s17, 0
      %p91 = por %p89, %p90
      %p92 = scmp.le.s32.totalorder 1, %s11
      %p93 = scmp.lt.s32.totalorder %s11, 3
      %p94 = pnand %p92, %p93
      %p95 = pneg %p94
      // Predicated region
      $region9: #{tpu_custom_call.1} parent=5 // pred_check
        _
      $region10: #{tpu_custom_call.1} parent=5 // pred_check_branch
        %97 = sbr.rel (%p94) target = $region12
      $region11: #{tpu_custom_call.1} parent=5 // pred_region
        %s98 = ssub.s32 %s11, 1
        // Predicated region
        $region13: #{tpu_custom_call.1} parent=11 // pred_check
          %p99 = pneg %p58
        $region14: #{tpu_custom_call.1} parent=11 // pred_check_branch
          %101 = sbr.rel (%p99) target = $region16
        $region15: #{tpu_custom_call.1} parent=11 // pred_region
          _
        $region16: #{tpu_custom_call.1} parent=11 // pred_fallthru
          _
      $region12: #{tpu_custom_call.1} parent=5 // pred_fallthru
        _
      %p102 = scmp.lt.s32.totalorder %s11, 2
      // Predicated region
      $region17: #{tpu_custom_call.1} parent=5 // pred_check
        %p103 = pneg %p102
      $region18: #{tpu_custom_call.1} parent=5 // pred_check_branch
        %105 = sbr.rel (%p103) target = $region20
      $region19: #{tpu_custom_call.1} parent=5 // pred_region
        // Predicated region
        $region21: #{tpu_custom_call.1} parent=19 // pred_check
          %p106 = pneg %p31
        $region22: #{tpu_custom_call.1} parent=19 // pred_check_branch
          %108 = sbr.rel (%p106) target = $region24
        $region23: #{tpu_custom_call.1} parent=19 // pred_region
          %s109 = smul.u32 4, %s11
          %p110 = scmp.lt.s32.totalorder %s109, 7
          %s111 = scalar_select %p110, %s109, 7
          %s112 = smul.addr %s111, 8
          %s113 = scalar_lea.vmem %s0, %s112
          %s114 = smul.u32 4, %s11
        $region24: #{tpu_custom_call.1} parent=19 // pred_fallthru
          _
      $region20: #{tpu_custom_call.1} parent=5 // pred_fallthru
        _
      %p115 = scmp.le.s32.totalorder 1, %s11
      %p116 = scmp.lt.s32.totalorder %s11, 3
      %p117 = pnand %p115, %p116
      %p118 = pneg %p117
      // Predicated region
      $region25: #{tpu_custom_call.1} parent=5 // pred_check
        _
      $region26: #{tpu_custom_call.1} parent=5 // pred_check_branch
        %120 = sbr.rel (%p117) target = $region28
      $region27: #{tpu_custom_call.1} parent=5 // pred_region
        %s121 = ssub.s32 %s11, 1
        %s122 = smul.u32 4, %s16
        %p123 = scmp.lt.s32.totalorder %s122, 7
        %s124 = scalar_select %p123, %s122, 7
        %s125 = smul.addr %s124, 8
        %s126 = scalar_lea.vmem %s0, %s125
        %p127 = pneg %p37
        %p128 = pneg %p34
        %p129 = pneg %p58
        %p130 = pneg %p55
        %p131 = pneg %p84
        %p132 = pneg %p81
        %s133 = sand.u32 %s71, 1
        %s134 = scalar_lea.sflag [#allocation3], %s133
        %s135 = sand.u32 %s71, 1
        %s136 = smul.addr %s135, 64
        %s137 = scalar_lea.vmem [#allocation2], %s136
        %s138 = smul.u32 4, %s16
        %p139 = scmp.lt.s32.totalorder %s138, 7
        %s140 = scalar_select %p139, %s138, 7
        %s141 = smul.addr %s140, 8
        %s142 = scalar_lea.vmem %s0, %s141
        %s143 = smul.u32 4, %s16
        %s144 = smul.u32 4, %s16
        %v145 = vld [vmem:[%s142] sm:$0xff]
        %v146 = vld [vmem:[%s142 + $0x8] sm:$0xff]
        %v147 = vld [vmem:[%s142 + $0x10] sm:$0xff]
        %v148 = vld [vmem:[%s142 + $0x18] sm:$0xff]
        %v149 = vld [vmem:[%s1] sm:$0xff]
        %v150 = vld [vmem:[%s1 + $0x8] sm:$0xff]
        %v151 = vld [vmem:[%s1 + $0x10] sm:$0xff]
        %v152 = vld [vmem:[%s1 + $0x18] sm:$0xff]
        %v153 = vld [vmem:[%s1 + $0x20] sm:$0xff]
        %v154 = vld [vmem:[%s1 + $0x28] sm:$0xff]
        %v155 = vld [vmem:[%s1 + $0x30] sm:$0xf]
        %v156 = vld [vmem:[%s1 + $0x38] sm:$0xf]
        %vm157 = vcmask 228352
        %v159 = vsel %vm157, %v145, 0
        %v162 = vsel %vm157, %v146, 0
        %v165 = vsel %vm157, %v147, 0
        %v168 = vsel %vm157, %v148, 0
        %vm170 = vcmask 1043456
        %v172 = vsel %vm170, %v155, 0
        %v175 = vsel %vm170, %v156, 0
        %177 = vmatprep.subr.mxu0 %v150
        %178 = vmatpush1.msra.mxu0 %v149
        %179 = vmatprep.subr.mxu0 %v152
        %180 = vmatpush1.msra.mxu0 %v151
        %181 = vmatprep.subr.mxu0 %v154
        %182 = vmatpush1.msra.mxu0 %v153
        %183 = vmatprep.subr.mxu0 %v175
        %184 = vmatpush1.msra.mxu0 %v172
        %185 = vmatprep.subr.mxu0 0.0
        %186 = vmatpush1.msra.mxu0 0.0
        %187 = vmatprep.subr.mxu0 0.0
        %188 = vmatpush1.msra.mxu0 0.0
        %189 = vmatprep.subr.mxu0 0.0
        %190 = vmatpush1.msra.mxu0 0.0
        %191 = vmatprep.subr.mxu0 0.0
        %192 = vmatpush1.msra.mxu0 0.0
        %193 = vmatprep.subr.mxu0 0.0
        %194 = vmatpush1.msra.mxu0 0.0
        %195 = vmatprep.subr.mxu0 0.0
        %196 = vmatpush1.msra.mxu0 0.0
        %197 = vmatprep.subr.mxu0 0.0
        %198 = vmatpush1.msra.mxu0 0.0
        %199 = vmatprep.subr.mxu0 0.0
        %200 = vmatpush1.msra.mxu0 0.0
        %201 = vmatprep.subr.mxu0 0.0
        %202 = vmatpush1.msra.mxu0 0.0
        %203 = vmatprep.subr.mxu0 0.0
        %204 = vmatpush1.msra.mxu0 0.0
        %205 = vmatprep.subr.mxu0 0.0
        %206 = vmatpush1.msra.mxu0 0.0
        %207 = vmatprep.subr.mxu0 0.0
        %208 = vmatpush1.msra.mxu0 0.0
        %209 = vmatprep.subr.mxu0 0.0
        %210 = vmatpush1.msra.mxu0 0.0
        %211 = vmatprep.subr.mxu0 0.0
        %212 = vmatpush1.msra.mxu0 0.0
        %213 = vmatprep.subr.mxu0 0.0
        %214 = vmatpush1.msra.mxu0 0.0
        %215 = vmatprep.subr.mxu0 0.0
        %216 = vmatpush1.msra.mxu0 0.0
        %217 = vmatprep.subr.mxu0 0.0
        %218 = vmatpush1.msra.mxu0 0.0
        %219 = vmatprep.subr.mxu0 0.0
        %220 = vmatpush1.msra.mxu0 0.0
        %221 = vmatprep.subr.mxu0 0.0
        %222 = vmatpush1.msra.mxu0 0.0
        %223 = vmatprep.subr.mxu0 0.0
        %224 = vmatpush1.msra.mxu0 0.0
        %225 = vmatprep.subr.mxu0 0.0
        %226 = vmatpush1.msra.mxu0 0.0
        %227 = vmatprep.subr.mxu0 0.0
        %228 = vmatpush1.msra.mxu0 0.0
        %229 = vmatprep.subr.mxu0 0.0
        %230 = vmatpush1.msra.mxu0 0.0
        %231 = vmatprep.subr.mxu0 0.0
        %232 = vmatpush1.msra.mxu0 0.0
        %233 = vmatprep.subr.mxu0 0.0
        %234 = vmatpush1.msra.mxu0 0.0
        %235 = vmatprep.subr.mxu0 0.0
        %236 = vmatpush1.msra.mxu0 0.0
        %237 = vmatprep.subr.mxu0 0.0
        %238 = vmatpush1.msra.mxu0 0.0
        %239 = vmatprep.subr.mxu0 0.0
        %240 = vmatpush1.msra.mxu0 0.0
        %241 = vmatprep.mubr.f32.mxu0 0.0
        %242 = vmatmul.mubr.f32.gmra.mrb[0].mxu0 %v159
        %v243 = vpop.f32.mrb[0].mxu0
        %v244 = vadd.f32 0.0, %v243
        %v245 = vpop.f32.mrb[0].mxu0
        %v246 = vadd.f32 0.0, %v245
        %247 = vmatprep.mubr.f32.mxu0 0.0
        %248 = vmatmul.mubr.f32.gmra.mrb[0].mxu0 %v162
        %v249 = vpop.f32.mrb[0].mxu0
        %v250 = vadd.f32 0.0, %v249
        %v251 = vpop.f32.mrb[0].mxu0
        %v252 = vadd.f32 0.0, %v251
        %253 = vmatprep.mubr.f32.mxu0 0.0
        %254 = vmatmul.mubr.f32.gmra.mrb[0].mxu0 %v165
        %v255 = vpop.f32.mrb[0].mxu0
        %v256 = vadd.f32 0.0, %v255
        %v257 = vpop.f32.mrb[0].mxu0
        %v258 = vadd.f32 0.0, %v257
        %259 = vmatprep.mubr.f32.mxu0 0.0
        %260 = vmatmul.mubr.f32.gmra.mrb[0].mxu0 %v168
        %v261 = vpop.f32.mrb[0].mxu0
        %v262 = vadd.f32 0.0, %v261
        %v263 = vpop.f32.mrb[0].mxu0
        %v264 = vadd.f32 0.0, %v263
        %265 = vdwg.mxu0
        %266 = vst [vmem:[%s137] sm:$0xff] %v244
        %vm267 = vcmask 523264
        %268 = vst.msk [vmem:[%s137 + $0x8] sm:$0xff] %vm267, %v246
        %269 = vst [vmem:[%s137 + $0x10] sm:$0xff] %v250
        %270 = vst.msk [vmem:[%s137 + $0x18] sm:$0xff] %vm267, %v252
        %271 = vst [vmem:[%s137 + $0x20] sm:$0xff] %v256
        %272 = vst.msk [vmem:[%s137 + $0x28] sm:$0xff] %vm267, %v258
        %273 = vst [vmem:[%s137 + $0x30] sm:$0xff] %v262
        %274 = vst.msk [vmem:[%s137 + $0x38] sm:$0xff] %vm267, %v264
        %s275 = sand.u32 %s71, 1
        %s276 = scalar_lea.sflag [#allocation3], %s275
        %s277 = sand.u32 %s71, 1
        %s278 = smul.addr %s277, 64
        %s279 = scalar_lea.vmem [#allocation2], %s278
        // Predicated region
        $region29: #{tpu_custom_call.1} parent=27 // pred_check
          %p280 = pneg %p81
        $region30: #{tpu_custom_call.1} parent=27 // pred_check_branch
          %282 = sbr.rel (%p280) target = $region32
        $region31: #{tpu_custom_call.1} parent=27 // pred_region
          %s283 = smul.u32 4, %s16
          %s285 = ssub.s32 1024, 1024
          %286 = vsyncadd %s276, %s285
          %s287 = smul.addr %s283, 2
          %s288 = smul.addr %s287, 128
          %s289 = scalar_lea.hbm %s2, %s288
          %s290 = sshll.u32 %s279, 4
          %s291 = int_to_ptr.vmem [resolvable:$true] %s290
          %296 = dma.vmem_to_hbm [thread:$0]  %s291, 1024, %s289, %s276, 256, 256, 16
        $region32: #{tpu_custom_call.1} parent=27 // pred_fallthru
          _
      $region28: #{tpu_custom_call.1} parent=5 // pred_fallthru
        _
      %p297 = scmp.le.s32.totalorder 2, %s11
      // Predicated region
      $region33: #{tpu_custom_call.1} parent=5 // pred_check
        %p298 = pneg %p297
      $region34: #{tpu_custom_call.1} parent=5 // pred_check_branch
        %300 = sbr.rel (%p298) target = $region36
      $region35: #{tpu_custom_call.1} parent=5 // pred_region
        %s301 = ssub.s32 %s11, 2
        // Predicated region
        $region37: #{tpu_custom_call.1} parent=35 // pred_check
          %p302 = pneg %p87
        $region38: #{tpu_custom_call.1} parent=35 // pred_check_branch
          %304 = sbr.rel (%p302) target = $region40
        $region39: #{tpu_custom_call.1} parent=35 // pred_region
          %s305 = sand.u32 %s72, 1
          %s306 = scalar_lea.sflag [#allocation3], %s305
          %s307 = sand.u32 %s72, 1
          %s308 = smul.addr %s307, 64
          %s309 = scalar_lea.vmem [#allocation2], %s308
          %310 = dma.done %s306, 1024
        $region40: #{tpu_custom_call.1} parent=35 // pred_fallthru
          _
      $region36: #{tpu_custom_call.1} parent=5 // pred_fallthru
        _
    $region6: #{tpu_custom_call.1} parent=1 // loop_footer
      %s15 = sadd.s32 1, %s11
    $region7: #{tpu_custom_call.1} parent=1 // loop_footer_branch
      %10 = sbr.rel target = $region3
    $region8: #{tpu_custom_call.1} parent=1 // loop_exit
      _
    %311 = vsyncpa [#allocation3], 1
    %s312 = scalar_lea.sflag [#allocation3], 1
    %313 = vsyncpa %s312, 1

</llo_original>
